<compile_context>
chip_gen: v7x
topology: tpu7x:2x2x1
jax: 0.10.0
libtpu: 0.0.40
codegen_flags: <defaults>
</compile_context>

<pallas_src>
import functools

import jax
import jax.numpy as jnp
from jax.experimental import pallas as pl
from jax.experimental.pallas import tpu as pltpu


def _round_up(n: int, m: int) -> int:
    return ((n + m - 1) // m) * m


def mlp_kernel(x_ref, w0_ref, w1_ref, w2_ref, o_ref):
    cdt = w0_ref.dtype
    # Load the (possibly partial) batch tile and cast to the MXU compute dtype.
    x = x_ref[...].astype(cdt)
    # Layer 0: Linear(n_features -> h0, bias=False) + ReLU (f32 accumulate,
    # ReLU on the f32 accumulator, downcast for the next MXU pass).
    h0 = jnp.dot(x, w0_ref[...], preferred_element_type=jnp.float32)
    h0 = jnp.maximum(h0, 0.0).astype(cdt)
    # Layer 1: Linear(h0 -> h1, bias=False) + ReLU.
    h1 = jnp.dot(h0, w1_ref[...], preferred_element_type=jnp.float32)
    h1 = jnp.maximum(h1, 0.0).astype(cdt)
    # Layer 2 (output): Linear(h1 -> n_output, bias=False), activation=None.
    y = jnp.dot(h1, w2_ref[...], preferred_element_type=jnp.float32)
    o_ref[...] = y.astype(o_ref.dtype)


def prepare_params(weights, *, compute_dtype=jnp.bfloat16, lane=128):
    """One-time (outside the per-call jit) cast + lane-pad of the weights.

    weights[i] has shape (in_i, out_i) == torch Linear .weight transposed.
    Hidden dims are zero-padded to multiples of `lane` so the inter-layer
    matmuls are lane-dense; zero padding is numerically exact (zero columns
    stay zero through ReLU and contract against zero rows of the next layer).
    The model input dim (layer-0 in-dim) and the final output dim are left
    unpadded so x / y carry no padded per-call HBM traffic.
    """
    cdt = jnp.dtype(compute_dtype)
    n = len(weights)
    prepared = []
    for i, w in enumerate(weights):
        in_d, out_d = w.shape
        in_p = in_d if i == 0 else _round_up(in_d, lane)
        out_p = out_d if i == n - 1 else _round_up(out_d, lane)
        prepared.append(
            jnp.zeros((in_p, out_p), cdt).at[:in_d, :out_d].set(w.astype(cdt)))
    return prepared


def _pick_tile_b(batch: int, tile_b: int) -> int:
    tb = min(tile_b, _round_up(batch, 8))
    # v7x has 2 TensorCores and "parallel" grid axes shard across them: make
    # sure batches large enough to split always produce >= 2 grid steps.
    if batch > 512:
        tb = min(tb, max(256, _round_up((batch + 1) // 2, 8)))
    return tb


def mlpnet_forward(x, w0, w1, w2, *, tile_b=1024, single_buffer_weights=True):
    """x: (B, n_features) float32, unpadded. w0/w1/w2: prepare_params() output.

    Returns f32 output of shape (B, n_output).
    Note: for tiny batches (B <= 128) a plain jnp MLP beats any pallas_call;
    this path pays off once the batch spans many lane-dense tiles.
    """
    B, K = x.shape
    assert w0.shape[0] == K, "w0 must be (n_features, H0p) from prepare_params"
    H0p = w0.shape[1]
    assert w1.shape[0] == H0p
    H1p = w1.shape[1]
    assert w2.shape[0] == H1p
    N = w2.shape[1]

    wdt = jnp.dtype(w0.dtype)
    TILE_B = _pick_tile_b(B, tile_b)
    grid = (pl.cdiv(B, TILE_B),)

    # Advisory cost estimate for XLA scheduling around the custom call.
    flops = 2 * B * (K * H0p + H0p * H1p + H1p * N)
    weight_bytes = (w0.size + w1.size + w2.size) * wdt.itemsize
    bytes_accessed = x.size * x.dtype.itemsize + weight_bytes + B * N * 4
    cost = pl.CostEstimate(flops=flops, transcendentals=0,
                           bytes_accessed=bytes_accessed)

    # Scoped VMEM: double-buffered x/out tiles + (single-buffered) resident
    # weights + intermediates, with 2x headroom, clamped to ~75% of this
    # chip's physical VMEM (~48 MiB on v7x, ~96 MiB on v5e/v6e).
    vmem_needed = (
        2 * TILE_B * K * x.dtype.itemsize            # x tile (double-buffered)
        + 2 * TILE_B * N * 4                         # out tile (double-buffered)
        + (2 - int(single_buffer_weights)) * weight_bytes
        + TILE_B * (H0p + H1p) * (4 + wdt.itemsize)  # f32 + cast intermediates
    )
    try:
        phys_vmem = pltpu.get_tpu_info().vmem_capacity_bytes
    except Exception:
        phys_vmem = 64 * 1024 * 1024                 # conservative (v7x)
    vmem_cap = int(phys_vmem * 3 // 4)
    vmem_limit = int(min(max(2 * vmem_needed, 32 * 1024 * 1024), vmem_cap))

    # Constant index_maps keep the weights VMEM-resident (DMA'd once);
    # Buffered(1) additionally drops their second pipeline buffer.
    if single_buffer_weights:
        w_mode = pl.Buffered(1)
        w_specs = [
            pl.BlockSpec((K, H0p), lambda i: (0, 0), pipeline_mode=w_mode),
            pl.BlockSpec((H0p, H1p), lambda i: (0, 0), pipeline_mode=w_mode),
            pl.BlockSpec((H1p, N), lambda i: (0, 0), pipeline_mode=w_mode),
        ]
    else:
        w_specs = [
            pl.BlockSpec((K, H0p), lambda i: (0, 0)),
            pl.BlockSpec((H0p, H1p), lambda i: (0, 0)),
            pl.BlockSpec((H1p, N), lambda i: (0, 0)),
        ]

    return pl.pallas_call(
        mlp_kernel,
        out_shape=jax.ShapeDtypeStruct((B, N), jnp.float32),
        grid_spec=pltpu.PrefetchScalarGridSpec(
            num_scalar_prefetch=0,
            grid=grid,
            in_specs=[pl.BlockSpec((TILE_B, K), lambda i: (i, 0))] + w_specs,
            out_specs=pl.BlockSpec((TILE_B, N), lambda i: (i, 0)),
        ),
        compiler_params=pltpu.CompilerParams(
            dimension_semantics=("parallel",),
            vmem_limit_bytes=vmem_limit,
        ),
        cost_estimate=cost,
    )(x, w0, w1, w2)


def init_params(key, n_features, n_hidden, n_output):
    """Deterministic Kaiming-uniform-like init, mirroring torch Linear shapes.
    Returned weights are (in, out) = torch weight (out, in) transposed."""
    dims = [n_features] + list(n_hidden) + [n_output]
    params = []
    for i in range(len(dims) - 1):
        key, sub = jax.random.split(key)
        fan_in, fan_out = dims[i], dims[i + 1]
        bound = 1.0 / jnp.sqrt(jnp.float32(fan_in))
        w = jax.random.uniform(sub, (fan_in, fan_out), jnp.float32, -bound, bound)
        params.append(w)
    return params


if __name__ == "__main__":
    # Small shapes consistent with the module: MLP on (batch, n_features).
    # TODO(synk): dropout / batch_norm / skip_connection='concat' branches of
    # LinearBlock are disabled in the default MLPnet config and not implemented.
    batch = 8
    n_features = 32
    n_hidden = (64, 32)   # stand-in for default '500,100' at small scale
    n_output = 16

    key = jax.random.PRNGKey(0)
    key, kx = jax.random.split(key)
    x = jax.random.normal(kx, (batch, n_features), jnp.float32)
    w0, w1, w2 = init_params(key, n_features, n_hidden, n_output)

    # One-time parameter prep (cast + lane-pad), outside the per-call jit.
    w0p, w1p, w2p = prepare_params([w0, w1, w2])

    try:
        fwd = jax.jit(functools.partial(mlpnet_forward,
                                        single_buffer_weights=True))
        out = jax.block_until_ready(fwd(x, w0p, w1p, w2p))
    except Exception:
        # Fallback for jax builds without BlockSpec pipeline_mode support.
        fwd = jax.jit(functools.partial(mlpnet_forward,
                                        single_buffer_weights=False))
        out = jax.block_until_ready(fwd(x, w0p, w1p, w2p))

    assert out.shape == (batch, n_output)

    # Reference 1: mimic the kernel's bf16-operand / f32-accumulate math.
    bf = jnp.bfloat16
    xb, w0b, w1b, w2b = (a.astype(bf) for a in (x, w0, w1, w2))
    r0 = jnp.maximum(jnp.dot(xb, w0b, preferred_element_type=jnp.float32),
                     0.0).astype(bf)
    r1 = jnp.maximum(jnp.dot(r0, w1b, preferred_element_type=jnp.float32),
                     0.0).astype(bf)
    ref_bf16 = jnp.dot(r1, w2b, preferred_element_type=jnp.float32)
    assert jnp.allclose(out, ref_bf16, atol=2e-3, rtol=2e-3)

    # Reference 2: full-f32 torch-equivalent forward (loose tolerance due to
    # the bf16 operand cast inside the kernel).
    ref_f32 = jnp.maximum(x @ w0, 0.0)
    ref_f32 = jnp.maximum(ref_f32 @ w1, 0.0)
    ref_f32 = ref_f32 @ w2
    assert jnp.allclose(out, ref_f32, atol=5e-2, rtol=5e-2)

    print("KERNEL_OK")
</pallas_src>

<mosaic_0001>
module attributes {stable_mosaic.version = 11 : i64} {
  func.func @mlp_kernel(%arg0: i32, %arg1: memref<8x32xf32, #tpu.memory_space<vmem>>, %arg2: memref<32x128xbf16, #tpu.memory_space<vmem>>, %arg3: memref<128x128xbf16, #tpu.memory_space<vmem>>, %arg4: memref<128x16xbf16, #tpu.memory_space<vmem>>, %arg5: memref<8x16xf32, #tpu.memory_space<vmem>>) attributes {dimension_semantics = [#tpu.dimension_semantics<parallel>], iteration_bounds = array<i64: 1>, scalar_prefetch = 0 : i64, scratch_operands = 0 : i64, tpu.core_type = #tpu.core_type<tc>, window_params = [{transform_indices = @transform_0, window_bounds = array<i64: 8, 32>}, {pipeline_mode = #tpu.pipeline_mode<synchronous>, transform_indices = @transform_1, window_bounds = array<i64: 32, 128>}, {pipeline_mode = #tpu.pipeline_mode<synchronous>, transform_indices = @transform_2, window_bounds = array<i64: 128, 128>}, {pipeline_mode = #tpu.pipeline_mode<synchronous>, transform_indices = @transform_3, window_bounds = array<i64: 128, 16>}, {transform_indices = @transform_4, window_bounds = array<i64: 8, 16>}]} {
    %c0 = arith.constant 0 : index
    %c0_0 = arith.constant 0 : index
    %0 = vector.load %arg1[%c0, %c0_0] : memref<8x32xf32, #tpu.memory_space<vmem>>, vector<8x32xf32>
    %1 = arith.truncf %0 : vector<8x32xf32> to vector<8x32xbf16>
    %c0_1 = arith.constant 0 : index
    %c0_2 = arith.constant 0 : index
    %2 = vector.load %arg2[%c0_1, %c0_2] : memref<32x128xbf16, #tpu.memory_space<vmem>>, vector<32x128xbf16>
    %cst = arith.constant dense<0.000000e+00> : vector<8x128xf32>
    %3 = tpu.matmul %1, %2, %cst {dimension_numbers = #tpu.dot_dimension_numbers<[1], [0], [0], [1], [0, 0, 1, 1], [], []>} : vector<8x32xbf16>, vector<32x128xbf16>, vector<8x128xf32> -> vector<8x128xf32>
    %cst_3 = arith.constant 0.000000e+00 : f32
    %4 = vector.broadcast %cst_3 : f32 to vector<8x128xf32>
    %5 = arith.maximumf %3, %4 : vector<8x128xf32>
    %6 = arith.truncf %5 : vector<8x128xf32> to vector<8x128xbf16>
    %c0_4 = arith.constant 0 : index
    %c0_5 = arith.constant 0 : index
    %7 = vector.load %arg3[%c0_4, %c0_5] : memref<128x128xbf16, #tpu.memory_space<vmem>>, vector<128x128xbf16>
    %cst_6 = arith.constant dense<0.000000e+00> : vector<8x128xf32>
    %8 = tpu.matmul %6, %7, %cst_6 {dimension_numbers = #tpu.dot_dimension_numbers<[1], [0], [0], [1], [0, 0, 1, 1], [], []>} : vector<8x128xbf16>, vector<128x128xbf16>, vector<8x128xf32> -> vector<8x128xf32>
    %cst_7 = arith.constant 0.000000e+00 : f32
    %9 = vector.broadcast %cst_7 : f32 to vector<8x128xf32>
    %10 = arith.maximumf %8, %9 : vector<8x128xf32>
    %11 = arith.truncf %10 : vector<8x128xf32> to vector<8x128xbf16>
    %c0_8 = arith.constant 0 : index
    %c0_9 = arith.constant 0 : index
    %12 = vector.load %arg4[%c0_8, %c0_9] : memref<128x16xbf16, #tpu.memory_space<vmem>>, vector<128x16xbf16>
    %cst_10 = arith.constant dense<0.000000e+00> : vector<8x16xf32>
    %13 = tpu.matmul %11, %12, %cst_10 {dimension_numbers = #tpu.dot_dimension_numbers<[1], [0], [0], [1], [0, 0, 1, 1], [], []>} : vector<8x128xbf16>, vector<128x16xbf16>, vector<8x16xf32> -> vector<8x16xf32>
    %c0_11 = arith.constant 0 : index
    %c0_12 = arith.constant 0 : index
    %14 = vector.load %arg5[%c0_11, %c0_12] : memref<8x16xf32, #tpu.memory_space<vmem>>, vector<8x16xf32>
    tpu.vector_store %arg5[%c0_11, %c0_12], %13 {strides = array<i32>} : memref<8x16xf32, #tpu.memory_space<vmem>>, vector<8x16xf32>,
    return
  }
  func.func @transform_0(%arg0: i32) -> (i32, i32) {
    %c0_i32 = arith.constant 0 : i32
    %c0_i32_0 = arith.constant 0 : i32
    return %arg0, %c0_i32 : i32, i32
  }
  func.func @transform_1(%arg0: i32) -> (i32, i32) {
    %c0_i32 = arith.constant 0 : i32
    %c0_i32_0 = arith.constant 0 : i32
    %c0_i32_1 = arith.constant 0 : i32
    return %c0_i32, %c0_i32_0 : i32, i32
  }
  func.func @transform_2(%arg0: i32) -> (i32, i32) {
    %c0_i32 = arith.constant 0 : i32
    %c0_i32_0 = arith.constant 0 : i32
    %c0_i32_1 = arith.constant 0 : i32
    return %c0_i32, %c0_i32_0 : i32, i32
  }
  func.func @transform_3(%arg0: i32) -> (i32, i32) {
    %c0_i32 = arith.constant 0 : i32
    %c0_i32_0 = arith.constant 0 : i32
    %c0_i32_1 = arith.constant 0 : i32
    return %c0_i32, %c0_i32_0 : i32, i32
  }
  func.func @transform_4(%arg0: i32) -> (i32, i32) {
    %c0_i32 = arith.constant 0 : i32
    %c0_i32_0 = arith.constant 0 : i32
    return %arg0, %c0_i32 : i32, i32
  }
}

module attributes {stable_mosaic.version = 11 : i64} {
  func.func @mlp_kernel(%arg0: i32, %arg1: memref<8x32xf32, #tpu.memory_space<vmem>>, %arg2: memref<32x128xbf16, #tpu.memory_space<vmem>>, %arg3: memref<128x128xbf16, #tpu.memory_space<vmem>>, %arg4: memref<128x16xbf16, #tpu.memory_space<vmem>>, %arg5: memref<8x16xf32, #tpu.memory_space<vmem>>) attributes {dimension_semantics = [#tpu.dimension_semantics<parallel>], iteration_bounds = array<i64: 1>, scalar_prefetch = 0 : i64, scratch_operands = 0 : i64, tpu.core_type = #tpu.core_type<tc>, window_params = [{transform_indices = @transform_0, window_bounds = array<i64: 8, 32>}, {pipeline_mode = #tpu.pipeline_mode<synchronous>, transform_indices = @transform_1, window_bounds = array<i64: 32, 128>}, {pipeline_mode = #tpu.pipeline_mode<synchronous>, transform_indices = @transform_2, window_bounds = array<i64: 128, 128>}, {pipeline_mode = #tpu.pipeline_mode<synchronous>, transform_indices = @transform_3, window_bounds = array<i64: 128, 16>}, {transform_indices = @transform_4, window_bounds = array<i64: 8, 16>}]} {
    %c0 = arith.constant 0 : index
    %c0_0 = arith.constant 0 : index
    %0 = vector.load %arg1[%c0, %c0_0] : memref<8x32xf32, #tpu.memory_space<vmem>>, vector<8x32xf32>
    %1 = arith.truncf %0 : vector<8x32xf32> to vector<8x32xbf16>
    %c0_1 = arith.constant 0 : index
    %c0_2 = arith.constant 0 : index
    %2 = vector.load %arg2[%c0_1, %c0_2] : memref<32x128xbf16, #tpu.memory_space<vmem>>, vector<32x128xbf16>
    %cst = arith.constant dense<0.000000e+00> : vector<8x128xf32>
    %3 = tpu.matmul %1, %2, %cst {dimension_numbers = #tpu.dot_dimension_numbers<[1], [0], [0], [1], [0, 0, 1, 1], [], []>} : vector<8x32xbf16>, vector<32x128xbf16>, vector<8x128xf32> -> vector<8x128xf32>
    %cst_3 = arith.constant 0.000000e+00 : f32
    %4 = vector.broadcast %cst_3 : f32 to vector<8x128xf32>
    %5 = arith.maximumf %3, %4 : vector<8x128xf32>
    %6 = arith.truncf %5 : vector<8x128xf32> to vector<8x128xbf16>
    %c0_4 = arith.constant 0 : index
    %c0_5 = arith.constant 0 : index
    %7 = vector.load %arg3[%c0_4, %c0_5] : memref<128x128xbf16, #tpu.memory_space<vmem>>, vector<128x128xbf16>
    %cst_6 = arith.constant dense<0.000000e+00> : vector<8x128xf32>
    %8 = tpu.matmul %6, %7, %cst_6 {dimension_numbers = #tpu.dot_dimension_numbers<[1], [0], [0], [1], [0, 0, 1, 1], [], []>} : vector<8x128xbf16>, vector<128x128xbf16>, vector<8x128xf32> -> vector<8x128xf32>
    %cst_7 = arith.constant 0.000000e+00 : f32
    %9 = vector.broadcast %cst_7 : f32 to vector<8x128xf32>
    %10 = arith.maximumf %8, %9 : vector<8x128xf32>
    %11 = arith.truncf %10 : vector<8x128xf32> to vector<8x128xbf16>
    %c0_8 = arith.constant 0 : index
    %c0_9 = arith.constant 0 : index
    %12 = vector.load %arg4[%c0_8, %c0_9] : memref<128x16xbf16, #tpu.memory_space<vmem>>, vector<128x16xbf16>
    %cst_10 = arith.constant dense<0.000000e+00> : vector<8x16xf32>
    %13 = tpu.matmul %11, %12, %cst_10 {dimension_numbers = #tpu.dot_dimension_numbers<[1], [0], [0], [1], [0, 0, 1, 1], [], []>} : vector<8x128xbf16>, vector<128x16xbf16>, vector<8x16xf32> -> vector<8x16xf32>
    %c0_11 = arith.constant 0 : index
    %c0_12 = arith.constant 0 : index
    %14 = vector.load %arg5[%c0_11, %c0_12] : memref<8x16xf32, #tpu.memory_space<vmem>>, vector<8x16xf32>
    tpu.vector_store %arg5[%c0_11, %c0_12], %13 {strides = array<i32>} : memref<8x16xf32, #tpu.memory_space<vmem>>, vector<8x16xf32>,
    return
  }
  func.func @transform_0(%arg0: i32) -> (i32, i32) {
    %c0_i32 = arith.constant 0 : i32
    %c0_i32_0 = arith.constant 0 : i32
    return %arg0, %c0_i32 : i32, i32
  }
  func.func @transform_1(%arg0: i32) -> (i32, i32) {
    %c0_i32 = arith.constant 0 : i32
    %c0_i32_0 = arith.constant 0 : i32
    %c0_i32_1 = arith.constant 0 : i32
    return %c0_i32, %c0_i32_0 : i32, i32
  }
  func.func @transform_2(%arg0: i32) -> (i32, i32) {
    %c0_i32 = arith.constant 0 : i32
    %c0_i32_0 = arith.constant 0 : i32
    %c0_i32_1 = arith.constant 0 : i32
    return %c0_i32, %c0_i32_0 : i32, i32
  }
  func.func @transform_3(%arg0: i32) -> (i32, i32) {
    %c0_i32 = arith.constant 0 : i32
    %c0_i32_0 = arith.constant 0 : i32
    %c0_i32_1 = arith.constant 0 : i32
    return %c0_i32, %c0_i32_0 : i32, i32
  }
  func.func @transform_4(%arg0: i32) -> (i32, i32) {
    %c0_i32 = arith.constant 0 : i32
    %c0_i32_0 = arith.constant 0 : i32
    return %arg0, %c0_i32 : i32, i32
  }
}

</mosaic_0001>

<llo_original>
// kernel: mlpnet_forward.1
$region0: #{mlpnet_forward.1}
  #allocation0 [shape = 'u32[]', space=smem, size = 0x4, offset = 0x4, fixed_abs, tag = 'smem constant byte address 0x4 - core index']
  #allocation1 [shape = 'u32[144,128]{1,0:T(1,128)}', space=vmem, size = 0x12000, scoped, tag = 'internal scratch']
  %s0 = inlined_call_operand.vmem [shape: f32[8,32], index: 0, kind: input, shape index: {}]
  %s1 = inlined_call_operand.hbm [shape: bf16[32,128], index: 1, kind: input, shape index: {}]
  %s2 = inlined_call_operand.vmem [shape: bf16[128,128], index: 2, kind: input, shape index: {}]
  %s3 = inlined_call_operand.vmem [shape: bf16[128,16], index: 3, kind: input, shape index: {}]
  %s4 = inlined_call_operand.hbm [shape: f32[8,16], index: 4, kind: output, shape index: {}]
  %s5 = sld [smem:[#allocation0]]
  $region30: #{mlpnet_forward.1} parent=0
    _
  %s7 = ssub.s32 1, %s5
  %s8 = scalar_select 0, %s7, %s5
  $region1: #{mlpnet_forward.1} parent=0
    #allocation2 [shape = 'u8[8192]{0}', space=vmem, size = 0x2000, scoped, tag = 'input window, operand 1, single buffered']
    #allocation3 [shape = 's32[1]{0}', space=sflag, size = 0x4, scoped, tag = 'scoped memory for mlpnet_forward.1']
    #allocation4 [shape = 's32[1]{0}', space=sflag, size = 0x4, scoped, tag = 'scoped memory for mlpnet_forward.1']
    #allocation5 [shape = 'u8[4096]{0}', space=vmem, size = 0x1000, scoped, tag = 'output window, operand 0, single buffered']
    %9 = vsyncpa [#allocation3], 0
    %10 = vsyncpa [#allocation4], 0
    // Predicated region
    $region2: #{mlpnet_forward.1} parent=1 // pred_check
      _
    $region3: #{mlpnet_forward.1} parent=1 // pred_check_branch
      %12 = sbr.rel (0) target = $region5
    $region4: #{mlpnet_forward.1} parent=1 // pred_region
      _
    $region5: #{mlpnet_forward.1} parent=1 // pred_fallthru
      _
    // Predicated region
    $region6: #{mlpnet_forward.1} parent=1 // pred_check
      _
    $region7: #{mlpnet_forward.1} parent=1 // pred_check_branch
      %14 = sbr.rel (0) target = $region9
    $region8: #{mlpnet_forward.1} parent=1 // pred_region
      %s16 = ssub.s32 256, 256
      %17 = vsyncadd [#allocation3], %s16
      %s18 = sshll.u32 [#allocation2], 4
      %s19 = int_to_ptr.vmem [resolvable:$true] %s18
      %24 = dma.hbm_to_vmem [thread:$0]  %s1, 256, %s19, [#allocation3], 64, 64, 4
    $region9: #{mlpnet_forward.1} parent=1 // pred_fallthru
      _
    // Predicated region
    $region10: #{mlpnet_forward.1} parent=1 // pred_check
      _
    $region11: #{mlpnet_forward.1} parent=1 // pred_check_branch
      %26 = sbr.rel (0) target = $region13
    $region12: #{mlpnet_forward.1} parent=1 // pred_region
      _
    $region13: #{mlpnet_forward.1} parent=1 // pred_fallthru
      _
    // Predicated region
    $region14: #{mlpnet_forward.1} parent=1 // pred_check
      _
    $region15: #{mlpnet_forward.1} parent=1 // pred_check_branch
      %28 = sbr.rel (0) target = $region17
    $region16: #{mlpnet_forward.1} parent=1 // pred_region
      _
    $region17: #{mlpnet_forward.1} parent=1 // pred_fallthru
      _
    // Predicated region
    $region18: #{mlpnet_forward.1} parent=1 // pred_check
      _
    $region19: #{mlpnet_forward.1} parent=1 // pred_check_branch
      %30 = sbr.rel (0) target = $region21
    $region20: #{mlpnet_forward.1} parent=1 // pred_region
      %31 = dma.done [#allocation3], 256
    $region21: #{mlpnet_forward.1} parent=1 // pred_fallthru
      _
    %v33 = vld [vmem:[%s0] sm:$0xff]
    %v34 = vpack.c.bf16 %v33, %v33
    %v35 = vld [vmem:[#allocation2] sm:$0xf]
    %v36 = vld [vmem:[#allocation2 + $0x4] sm:$0xf]
    %v37 = vld [vmem:[#allocation2 + $0x8] sm:$0xf]
    %v38 = vld [vmem:[#allocation2 + $0xc] sm:$0xf]
    %v43 = vunpack.c.l.b16 %v35
    %v44 = vunpack.c.l.b16 %v36
    %v45 = vunpack.c.l.b16 %v37
    %v46 = vunpack.c.l.b16 %v38
    %v47 = vpack.c.b16 %v44, %v43
    %v48 = vpack.c.b16 %v46, %v45
    %vm51 = vcmask 261120
    %v53 = vsel %vm51, %v34, 0
    %55 = vmatprep.subr.bf16.mxu0 0
    %56 = vmatpush1.bf16.msra.mxu0 %v47
    %57 = vmatprep.subr.bf16.mxu0 0
    %58 = vmatpush1.bf16.msra.mxu0 %v48
    %59 = vmatprep.subr.bf16.mxu0 0
    %60 = vmatpush1.bf16.msra.mxu0 0
    %61 = vmatprep.subr.bf16.mxu0 0
    %62 = vmatpush1.bf16.msra.mxu0 0
    %63 = vmatprep.subr.bf16.mxu0 0
    %64 = vmatpush1.bf16.msra.mxu0 0
    %65 = vmatprep.subr.bf16.mxu0 0
    %66 = vmatpush1.bf16.msra.mxu0 0
    %67 = vmatprep.subr.bf16.mxu0 0
    %68 = vmatpush1.bf16.msra.mxu0 0
    %69 = vmatprep.subr.bf16.mxu0 0
    %70 = vmatpush1.bf16.msra.mxu0 0
    %71 = vmatprep.subr.bf16.mxu0 0
    %72 = vmatpush1.bf16.msra.mxu0 0
    %73 = vmatprep.subr.bf16.mxu0 0
    %74 = vmatpush1.bf16.msra.mxu0 0
    %75 = vmatprep.subr.bf16.mxu0 0
    %76 = vmatpush1.bf16.msra.mxu0 0
    %77 = vmatprep.subr.bf16.mxu0 0
    %78 = vmatpush1.bf16.msra.mxu0 0
    %79 = vmatprep.subr.bf16.mxu0 0
    %80 = vmatpush1.bf16.msra.mxu0 0
    %81 = vmatprep.subr.bf16.mxu0 0
    %82 = vmatpush1.bf16.msra.mxu0 0
    %83 = vmatprep.subr.bf16.mxu0 0
    %84 = vmatpush1.bf16.msra.mxu0 0
    %85 = vmatprep.subr.bf16.mxu0 0
    %86 = vmatpush1.bf16.msra.mxu0 0
    %87 = vmatprep.mubr.bf16.mxu0 0
    %88 = vmatmul.mubr.bf16.gmra.mrb[0].mxu0 %v53
    %v89 = vpop.f32.mrb[0].mxu0
    %v90 = vadd.f32 0.0, %v89
    %v91 = vpop.f32.mrb[0].mxu0
    %v92 = vpop.f32.mrb[0].mxu0
    %v93 = vpop.f32.mrb[0].mxu0
    %94 = vdwg.mxu0
    %v95 = vmax.f32 %v90, 0.0
    %v96 = vpack.c.bf16 %v95, %v95
    %v97 = vld [vmem:[%s2] sm:$0xf]
    %v98 = vld [vmem:[%s2 + $0x4] sm:$0xf]
    %v99 = vld [vmem:[%s2 + $0x8] sm:$0xf]
    %v100 = vld [vmem:[%s2 + $0xc] sm:$0xf]
    %v101 = vld [vmem:[%s2 + $0x10] sm:$0xf]
    %v102 = vld [vmem:[%s2 + $0x14] sm:$0xf]
    %v103 = vld [vmem:[%s2 + $0x18] sm:$0xf]
    %v104 = vld [vmem:[%s2 + $0x1c] sm:$0xf]
    %v105 = vld [vmem:[%s2 + $0x20] sm:$0xf]
    %v106 = vld [vmem:[%s2 + $0x24] sm:$0xf]
    %v107 = vld [vmem:[%s2 + $0x28] sm:$0xf]
    %v108 = vld [vmem:[%s2 + $0x2c] sm:$0xf]
    %v109 = vld [vmem:[%s2 + $0x30] sm:$0xf]
    %v110 = vld [vmem:[%s2 + $0x34] sm:$0xf]
    %v111 = vld [vmem:[%s2 + $0x38] sm:$0xf]
    %v112 = vld [vmem:[%s2 + $0x3c] sm:$0xf]
    %v129 = vunpack.c.l.b16 %v97
    %v130 = vunpack.c.l.b16 %v98
    %v131 = vunpack.c.l.b16 %v99
    %v132 = vunpack.c.l.b16 %v100
    %v133 = vunpack.c.l.b16 %v101
    %v134 = vunpack.c.l.b16 %v102
    %v135 = vunpack.c.l.b16 %v103
    %v136 = vunpack.c.l.b16 %v104
    %v137 = vunpack.c.l.b16 %v105
    %v138 = vunpack.c.l.b16 %v106
    %v139 = vunpack.c.l.b16 %v107
    %v140 = vunpack.c.l.b16 %v108
    %v141 = vunpack.c.l.b16 %v109
    %v142 = vunpack.c.l.b16 %v110
    %v143 = vunpack.c.l.b16 %v111
    %v144 = vunpack.c.l.b16 %v112
    %v145 = vpack.c.b16 %v130, %v129
    %v146 = vpack.c.b16 %v132, %v131
    %v147 = vpack.c.b16 %v134, %v133
    %v148 = vpack.c.b16 %v136, %v135
    %v149 = vpack.c.b16 %v138, %v137
    %v150 = vpack.c.b16 %v140, %v139
    %v151 = vpack.c.b16 %v142, %v141
    %v152 = vpack.c.b16 %v144, %v143
    %161 = vmatprep.subr.bf16.mxu0 0
    %162 = vmatpush1.bf16.msra.mxu0 %v145
    %163 = vmatprep.subr.bf16.mxu0 0
    %164 = vmatpush1.bf16.msra.mxu0 %v146
    %165 = vmatprep.subr.bf16.mxu0 0
    %166 = vmatpush1.bf16.msra.mxu0 %v147
    %167 = vmatprep.subr.bf16.mxu0 0
    %168 = vmatpush1.bf16.msra.mxu0 %v148
    %169 = vmatprep.subr.bf16.mxu0 0
    %170 = vmatpush1.bf16.msra.mxu0 %v149
    %171 = vmatprep.subr.bf16.mxu0 0
    %172 = vmatpush1.bf16.msra.mxu0 %v150
    %173 = vmatprep.subr.bf16.mxu0 0
    %174 = vmatpush1.bf16.msra.mxu0 %v151
    %175 = vmatprep.subr.bf16.mxu0 0
    %176 = vmatpush1.bf16.msra.mxu0 %v152
    %177 = vmatprep.subr.bf16.mxu0 0
    %178 = vmatpush1.bf16.msra.mxu0 0
    %179 = vmatprep.subr.bf16.mxu0 0
    %180 = vmatpush1.bf16.msra.mxu0 0
    %181 = vmatprep.subr.bf16.mxu0 0
    %182 = vmatpush1.bf16.msra.mxu0 0
    %183 = vmatprep.subr.bf16.mxu0 0
    %184 = vmatpush1.bf16.msra.mxu0 0
    %185 = vmatprep.subr.bf16.mxu0 0
    %186 = vmatpush1.bf16.msra.mxu0 0
    %187 = vmatprep.subr.bf16.mxu0 0
    %188 = vmatpush1.bf16.msra.mxu0 0
    %189 = vmatprep.subr.bf16.mxu0 0
    %190 = vmatpush1.bf16.msra.mxu0 0
    %191 = vmatprep.subr.bf16.mxu0 0
    %192 = vmatpush1.bf16.msra.mxu0 0
    %193 = vmatprep.mubr.bf16.mxu0 0
    %194 = vmatmul.mubr.bf16.gmra.mrb[0].mxu0 %v96
    %v195 = vpop.f32.mrb[0].mxu0
    %v196 = vadd.f32 0.0, %v195
    %v197 = vpop.f32.mrb[0].mxu0
    %v198 = vpop.f32.mrb[0].mxu0
    %v199 = vpop.f32.mrb[0].mxu0
    %200 = vdwg.mxu0
    %v201 = vmax.f32 %v196, 0.0
    %v202 = vpack.c.bf16 %v201, %v201
    %v203 = vld [vmem:[%s3] sm:$0xf]
    %v204 = vld [vmem:[%s3 + $0x4] sm:$0xf]
    %v205 = vld [vmem:[%s3 + $0x8] sm:$0xf]
    %v206 = vld [vmem:[%s3 + $0xc] sm:$0xf]
    %v207 = vld [vmem:[%s3 + $0x10] sm:$0xf]
    %v208 = vld [vmem:[%s3 + $0x14] sm:$0xf]
    %v209 = vld [vmem:[%s3 + $0x18] sm:$0xf]
    %v210 = vld [vmem:[%s3 + $0x1c] sm:$0xf]
    %v211 = vld [vmem:[%s3 + $0x20] sm:$0xf]
    %v212 = vld [vmem:[%s3 + $0x24] sm:$0xf]
    %v213 = vld [vmem:[%s3 + $0x28] sm:$0xf]
    %v214 = vld [vmem:[%s3 + $0x2c] sm:$0xf]
    %v215 = vld [vmem:[%s3 + $0x30] sm:$0xf]
    %v216 = vld [vmem:[%s3 + $0x34] sm:$0xf]
    %v217 = vld [vmem:[%s3 + $0x38] sm:$0xf]
    %v218 = vld [vmem:[%s3 + $0x3c] sm:$0xf]
    %v235 = vunpack.c.l.b16 %v203
    %v236 = vunpack.c.l.b16 %v204
    %v237 = vunpack.c.l.b16 %v205
    %v238 = vunpack.c.l.b16 %v206
    %v239 = vunpack.c.l.b16 %v207
    %v240 = vunpack.c.l.b16 %v208
    %v241 = vunpack.c.l.b16 %v209
    %v242 = vunpack.c.l.b16 %v210
    %v243 = vunpack.c.l.b16 %v211
    %v244 = vunpack.c.l.b16 %v212
    %v245 = vunpack.c.l.b16 %v213
    %v246 = vunpack.c.l.b16 %v214
    %v247 = vunpack.c.l.b16 %v215
    %v248 = vunpack.c.l.b16 %v216
    %v249 = vunpack.c.l.b16 %v217
    %v250 = vunpack.c.l.b16 %v218
    %v251 = vpack.c.b16 %v236, %v235
    %v252 = vpack.c.b16 %v238, %v237
    %v253 = vpack.c.b16 %v240, %v239
    %v254 = vpack.c.b16 %v242, %v241
    %v255 = vpack.c.b16 %v244, %v243
    %v256 = vpack.c.b16 %v246, %v245
    %v257 = vpack.c.b16 %v248, %v247
    %v258 = vpack.c.b16 %v250, %v249
    %267 = vmatprep.subr.bf16.mxu0 0
    %268 = vmatpush1.bf16.msra.mxu0 %v251
    %269 = vmatprep.subr.bf16.mxu0 0
    %270 = vmatpush1.bf16.msra.mxu0 %v252
    %271 = vmatprep.subr.bf16.mxu0 0
    %272 = vmatpush1.bf16.msra.mxu0 %v253
    %273 = vmatprep.subr.bf16.mxu0 0
    %274 = vmatpush1.bf16.msra.mxu0 %v254
    %275 = vmatprep.subr.bf16.mxu0 0
    %276 = vmatpush1.bf16.msra.mxu0 %v255
    %277 = vmatprep.subr.bf16.mxu0 0
    %278 = vmatpush1.bf16.msra.mxu0 %v256
    %279 = vmatprep.subr.bf16.mxu0 0
    %280 = vmatpush1.bf16.msra.mxu0 %v257
    %281 = vmatprep.subr.bf16.mxu0 0
    %282 = vmatpush1.bf16.msra.mxu0 %v258
    %283 = vmatprep.subr.bf16.mxu0 0
    %284 = vmatpush1.bf16.msra.mxu0 0
    %285 = vmatprep.subr.bf16.mxu0 0
    %286 = vmatpush1.bf16.msra.mxu0 0
    %287 = vmatprep.subr.bf16.mxu0 0
    %288 = vmatpush1.bf16.msra.mxu0 0
    %289 = vmatprep.subr.bf16.mxu0 0
    %290 = vmatpush1.bf16.msra.mxu0 0
    %291 = vmatprep.subr.bf16.mxu0 0
    %292 = vmatpush1.bf16.msra.mxu0 0
    %293 = vmatprep.subr.bf16.mxu0 0
    %294 = vmatpush1.bf16.msra.mxu0 0
    %295 = vmatprep.subr.bf16.mxu0 0
    %296 = vmatpush1.bf16.msra.mxu0 0
    %297 = vmatprep.subr.bf16.mxu0 0
    %298 = vmatpush1.bf16.msra.mxu0 0
    %299 = vmatprep.mubr.bf16.mxu0 0
    %300 = vmatmul.mubr.bf16.gmra.mrb[0].mxu0 %v202
    %v301 = vpop.f32.mrb[0].mxu0
    %v302 = vadd.f32 0.0, %v301
    %v303 = vpop.f32.mrb[0].mxu0
    %v304 = vpop.f32.mrb[0].mxu0
    %v305 = vpop.f32.mrb[0].mxu0
    %306 = vdwg.mxu0
    %vm307 = vcmask 130048
    %308 = vst.msk [vmem:[#allocation5] sm:$0xff] %vm307, %v302
    // Predicated region
    $region22: #{mlpnet_forward.1} parent=1 // pred_check
      _
    $region23: #{mlpnet_forward.1} parent=1 // pred_check_branch
      %310 = sbr.rel (0) target = $region25
    $region24: #{mlpnet_forward.1} parent=1 // pred_region
      %s312 = ssub.s32 128, 128
      %313 = vsyncadd [#allocation4], %s312
      %s315 = sshll.u32 [#allocation5], 4
      %s316 = int_to_ptr.vmem [resolvable:$true] %s315
      %318 = dma.vmem_to_hbm [thread:$0]  %s316, 128, %s4, [#allocation4]
    $region25: #{mlpnet_forward.1} parent=1 // pred_fallthru
      _
    // Predicated region
    $region26: #{mlpnet_forward.1} parent=1 // pred_check
      _
    $region27: #{mlpnet_forward.1} parent=1 // pred_check_branch
      %320 = sbr.rel (0) target = $region29
    $region28: #{mlpnet_forward.1} parent=1 // pred_region
      %321 = dma.done [#allocation4], 128
    $region29: #{mlpnet_forward.1} parent=1 // pred_fallthru
      _
    %322 = vsyncpa [#allocation3], 1
    %323 = vsyncpa [#allocation4], 1

// kernel: mlpnet_forward.1
$region0: #{mlpnet_forward.1}
  #allocation0 [shape = 'u32[]', space=smem, size = 0x4, offset = 0x4, fixed_abs, tag = 'smem constant byte address 0x4 - core index']
  #allocation1 [shape = 'u32[144,128]{1,0:T(1,128)}', space=vmem, size = 0x12000, scoped, tag = 'internal scratch']
  %s0 = inlined_call_operand.vmem [shape: f32[8,32], index: 0, kind: input, shape index: {}]
  %s1 = inlined_call_operand.hbm [shape: bf16[32,128], index: 1, kind: input, shape index: {}]
  %s2 = inlined_call_operand.vmem [shape: bf16[128,128], index: 2, kind: input, shape index: {}]
  %s3 = inlined_call_operand.vmem [shape: bf16[128,16], index: 3, kind: input, shape index: {}]
  %s4 = inlined_call_operand.hbm [shape: f32[8,16], index: 4, kind: output, shape index: {}]
  %s5 = sld [smem:[#allocation0]]
  $region30: #{mlpnet_forward.1} parent=0
    _
  %s7 = ssub.s32 1, %s5
  %s8 = scalar_select 0, %s7, %s5
  $region1: #{mlpnet_forward.1} parent=0
    #allocation2 [shape = 'u8[8192]{0}', space=vmem, size = 0x2000, scoped, tag = 'input window, operand 1, single buffered']
    #allocation3 [shape = 's32[1]{0}', space=sflag, size = 0x4, scoped, tag = 'scoped memory for mlpnet_forward.1']
    #allocation4 [shape = 's32[1]{0}', space=sflag, size = 0x4, scoped, tag = 'scoped memory for mlpnet_forward.1']
    #allocation5 [shape = 'u8[4096]{0}', space=vmem, size = 0x1000, scoped, tag = 'output window, operand 0, single buffered']
    %9 = vsyncpa [#allocation3], 0
    %10 = vsyncpa [#allocation4], 0
    // Predicated region
    $region2: #{mlpnet_forward.1} parent=1 // pred_check
      _
    $region3: #{mlpnet_forward.1} parent=1 // pred_check_branch
      %12 = sbr.rel (0) target = $region5
    $region4: #{mlpnet_forward.1} parent=1 // pred_region
      _
    $region5: #{mlpnet_forward.1} parent=1 // pred_fallthru
      _
    // Predicated region
    $region6: #{mlpnet_forward.1} parent=1 // pred_check
      _
    $region7: #{mlpnet_forward.1} parent=1 // pred_check_branch
      %14 = sbr.rel (0) target = $region9
    $region8: #{mlpnet_forward.1} parent=1 // pred_region
      %s16 = ssub.s32 256, 256
      %17 = vsyncadd [#allocation3], %s16
      %s18 = sshll.u32 [#allocation2], 4
      %s19 = int_to_ptr.vmem [resolvable:$true] %s18
      %24 = dma.hbm_to_vmem [thread:$0]  %s1, 256, %s19, [#allocation3], 64, 64, 4
    $region9: #{mlpnet_forward.1} parent=1 // pred_fallthru
      _
    // Predicated region
    $region10: #{mlpnet_forward.1} parent=1 // pred_check
      _
    $region11: #{mlpnet_forward.1} parent=1 // pred_check_branch
      %26 = sbr.rel (0) target = $region13
    $region12: #{mlpnet_forward.1} parent=1 // pred_region
      _
    $region13: #{mlpnet_forward.1} parent=1 // pred_fallthru
      _
    // Predicated region
    $region14: #{mlpnet_forward.1} parent=1 // pred_check
      _
    $region15: #{mlpnet_forward.1} parent=1 // pred_check_branch
      %28 = sbr.rel (0) target = $region17
    $region16: #{mlpnet_forward.1} parent=1 // pred_region
      _
    $region17: #{mlpnet_forward.1} parent=1 // pred_fallthru
      _
    // Predicated region
    $region18: #{mlpnet_forward.1} parent=1 // pred_check
      _
    $region19: #{mlpnet_forward.1} parent=1 // pred_check_branch
      %30 = sbr.rel (0) target = $region21
    $region20: #{mlpnet_forward.1} parent=1 // pred_region
      %31 = dma.done [#allocation3], 256
    $region21: #{mlpnet_forward.1} parent=1 // pred_fallthru
      _
    %v33 = vld [vmem:[%s0] sm:$0xff]
    %v34 = vpack.c.bf16 %v33, %v33
    %v35 = vld [vmem:[#allocation2] sm:$0xf]
    %v36 = vld [vmem:[#allocation2 + $0x4] sm:$0xf]
    %v37 = vld [vmem:[#allocation2 + $0x8] sm:$0xf]
    %v38 = vld [vmem:[#allocation2 + $0xc] sm:$0xf]
    %v43 = vunpack.c.l.b16 %v35
    %v44 = vunpack.c.l.b16 %v36
    %v45 = vunpack.c.l.b16 %v37
    %v46 = vunpack.c.l.b16 %v38
    %v47 = vpack.c.b16 %v44, %v43
    %v48 = vpack.c.b16 %v46, %v45
    %vm51 = vcmask 261120
    %v53 = vsel %vm51, %v34, 0
    %55 = vmatprep.subr.bf16.mxu0 0
    %56 = vmatpush1.bf16.msra.mxu0 %v47
    %57 = vmatprep.subr.bf16.mxu0 0
    %58 = vmatpush1.bf16.msra.mxu0 %v48
    %59 = vmatprep.subr.bf16.mxu0 0
    %60 = vmatpush1.bf16.msra.mxu0 0
    %61 = vmatprep.subr.bf16.mxu0 0
    %62 = vmatpush1.bf16.msra.mxu0 0
    %63 = vmatprep.subr.bf16.mxu0 0
    %64 = vmatpush1.bf16.msra.mxu0 0
    %65 = vmatprep.subr.bf16.mxu0 0
    %66 = vmatpush1.bf16.msra.mxu0 0
    %67 = vmatprep.subr.bf16.mxu0 0
    %68 = vmatpush1.bf16.msra.mxu0 0
    %69 = vmatprep.subr.bf16.mxu0 0
    %70 = vmatpush1.bf16.msra.mxu0 0
    %71 = vmatprep.subr.bf16.mxu0 0
    %72 = vmatpush1.bf16.msra.mxu0 0
    %73 = vmatprep.subr.bf16.mxu0 0
    %74 = vmatpush1.bf16.msra.mxu0 0
    %75 = vmatprep.subr.bf16.mxu0 0
    %76 = vmatpush1.bf16.msra.mxu0 0
    %77 = vmatprep.subr.bf16.mxu0 0
    %78 = vmatpush1.bf16.msra.mxu0 0
    %79 = vmatprep.subr.bf16.mxu0 0
    %80 = vmatpush1.bf16.msra.mxu0 0
    %81 = vmatprep.subr.bf16.mxu0 0
    %82 = vmatpush1.bf16.msra.mxu0 0
    %83 = vmatprep.subr.bf16.mxu0 0
    %84 = vmatpush1.bf16.msra.mxu0 0
    %85 = vmatprep.subr.bf16.mxu0 0
    %86 = vmatpush1.bf16.msra.mxu0 0
    %87 = vmatprep.mubr.bf16.mxu0 0
    %88 = vmatmul.mubr.bf16.gmra.mrb[0].mxu0 %v53
    %v89 = vpop.f32.mrb[0].mxu0
    %v90 = vadd.f32 0.0, %v89
    %v91 = vpop.f32.mrb[0].mxu0
    %v92 = vpop.f32.mrb[0].mxu0
    %v93 = vpop.f32.mrb[0].mxu0
    %94 = vdwg.mxu0
    %v95 = vmax.f32 %v90, 0.0
    %v96 = vpack.c.bf16 %v95, %v95
    %v97 = vld [vmem:[%s2] sm:$0xf]
    %v98 = vld [vmem:[%s2 + $0x4] sm:$0xf]
    %v99 = vld [vmem:[%s2 + $0x8] sm:$0xf]
    %v100 = vld [vmem:[%s2 + $0xc] sm:$0xf]
    %v101 = vld [vmem:[%s2 + $0x10] sm:$0xf]
    %v102 = vld [vmem:[%s2 + $0x14] sm:$0xf]
    %v103 = vld [vmem:[%s2 + $0x18] sm:$0xf]
    %v104 = vld [vmem:[%s2 + $0x1c] sm:$0xf]
    %v105 = vld [vmem:[%s2 + $0x20] sm:$0xf]
    %v106 = vld [vmem:[%s2 + $0x24] sm:$0xf]
    %v107 = vld [vmem:[%s2 + $0x28] sm:$0xf]
    %v108 = vld [vmem:[%s2 + $0x2c] sm:$0xf]
    %v109 = vld [vmem:[%s2 + $0x30] sm:$0xf]
    %v110 = vld [vmem:[%s2 + $0x34] sm:$0xf]
    %v111 = vld [vmem:[%s2 + $0x38] sm:$0xf]
    %v112 = vld [vmem:[%s2 + $0x3c] sm:$0xf]
    %v129 = vunpack.c.l.b16 %v97
    %v130 = vunpack.c.l.b16 %v98
    %v131 = vunpack.c.l.b16 %v99
    %v132 = vunpack.c.l.b16 %v100
    %v133 = vunpack.c.l.b16 %v101
    %v134 = vunpack.c.l.b16 %v102
    %v135 = vunpack.c.l.b16 %v103
    %v136 = vunpack.c.l.b16 %v104
    %v137 = vunpack.c.l.b16 %v105
    %v138 = vunpack.c.l.b16 %v106
    %v139 = vunpack.c.l.b16 %v107
    %v140 = vunpack.c.l.b16 %v108
    %v141 = vunpack.c.l.b16 %v109
    %v142 = vunpack.c.l.b16 %v110
    %v143 = vunpack.c.l.b16 %v111
    %v144 = vunpack.c.l.b16 %v112
    %v145 = vpack.c.b16 %v130, %v129
    %v146 = vpack.c.b16 %v132, %v131
    %v147 = vpack.c.b16 %v134, %v133
    %v148 = vpack.c.b16 %v136, %v135
    %v149 = vpack.c.b16 %v138, %v137
    %v150 = vpack.c.b16 %v140, %v139
    %v151 = vpack.c.b16 %v142, %v141
    %v152 = vpack.c.b16 %v144, %v143
    %161 = vmatprep.subr.bf16.mxu0 0
    %162 = vmatpush1.bf16.msra.mxu0 %v145
    %163 = vmatprep.subr.bf16.mxu0 0
    %164 = vmatpush1.bf16.msra.mxu0 %v146
    %165 = vmatprep.subr.bf16.mxu0 0
    %166 = vmatpush1.bf16.msra.mxu0 %v147
    %167 = vmatprep.subr.bf16.mxu0 0
    %168 = vmatpush1.bf16.msra.mxu0 %v148
    %169 = vmatprep.subr.bf16.mxu0 0
    %170 = vmatpush1.bf16.msra.mxu0 %v149
    %171 = vmatprep.subr.bf16.mxu0 0
    %172 = vmatpush1.bf16.msra.mxu0 %v150
    %173 = vmatprep.subr.bf16.mxu0 0
    %174 = vmatpush1.bf16.msra.mxu0 %v151
    %175 = vmatprep.subr.bf16.mxu0 0
    %176 = vmatpush1.bf16.msra.mxu0 %v152
    %177 = vmatprep.subr.bf16.mxu0 0
    %178 = vmatpush1.bf16.msra.mxu0 0
    %179 = vmatprep.subr.bf16.mxu0 0
    %180 = vmatpush1.bf16.msra.mxu0 0
    %181 = vmatprep.subr.bf16.mxu0 0
    %182 = vmatpush1.bf16.msra.mxu0 0
    %183 = vmatprep.subr.bf16.mxu0 0
    %184 = vmatpush1.bf16.msra.mxu0 0
    %185 = vmatprep.subr.bf16.mxu0 0
    %186 = vmatpush1.bf16.msra.mxu0 0
    %187 = vmatprep.subr.bf16.mxu0 0
    %188 = vmatpush1.bf16.msra.mxu0 0
    %189 = vmatprep.subr.bf16.mxu0 0
    %190 = vmatpush1.bf16.msra.mxu0 0
    %191 = vmatprep.subr.bf16.mxu0 0
    %192 = vmatpush1.bf16.msra.mxu0 0
    %193 = vmatprep.mubr.bf16.mxu0 0
    %194 = vmatmul.mubr.bf16.gmra.mrb[0].mxu0 %v96
    %v195 = vpop.f32.mrb[0].mxu0
    %v196 = vadd.f32 0.0, %v195
    %v197 = vpop.f32.mrb[0].mxu0
    %v198 = vpop.f32.mrb[0].mxu0
    %v199 = vpop.f32.mrb[0].mxu0
    %200 = vdwg.mxu0
    %v201 = vmax.f32 %v196, 0.0
    %v202 = vpack.c.bf16 %v201, %v201
    %v203 = vld [vmem:[%s3] sm:$0xf]
    %v204 = vld [vmem:[%s3 + $0x4] sm:$0xf]
    %v205 = vld [vmem:[%s3 + $0x8] sm:$0xf]
    %v206 = vld [vmem:[%s3 + $0xc] sm:$0xf]
    %v207 = vld [vmem:[%s3 + $0x10] sm:$0xf]
    %v208 = vld [vmem:[%s3 + $0x14] sm:$0xf]
    %v209 = vld [vmem:[%s3 + $0x18] sm:$0xf]
    %v210 = vld [vmem:[%s3 + $0x1c] sm:$0xf]
    %v211 = vld [vmem:[%s3 + $0x20] sm:$0xf]
    %v212 = vld [vmem:[%s3 + $0x24] sm:$0xf]
    %v213 = vld [vmem:[%s3 + $0x28] sm:$0xf]
    %v214 = vld [vmem:[%s3 + $0x2c] sm:$0xf]
    %v215 = vld [vmem:[%s3 + $0x30] sm:$0xf]
    %v216 = vld [vmem:[%s3 + $0x34] sm:$0xf]
    %v217 = vld [vmem:[%s3 + $0x38] sm:$0xf]
    %v218 = vld [vmem:[%s3 + $0x3c] sm:$0xf]
    %v235 = vunpack.c.l.b16 %v203
    %v236 = vunpack.c.l.b16 %v204
    %v237 = vunpack.c.l.b16 %v205
    %v238 = vunpack.c.l.b16 %v206
    %v239 = vunpack.c.l.b16 %v207
    %v240 = vunpack.c.l.b16 %v208
    %v241 = vunpack.c.l.b16 %v209
    %v242 = vunpack.c.l.b16 %v210
    %v243 = vunpack.c.l.b16 %v211
    %v244 = vunpack.c.l.b16 %v212
    %v245 = vunpack.c.l.b16 %v213
    %v246 = vunpack.c.l.b16 %v214
    %v247 = vunpack.c.l.b16 %v215
    %v248 = vunpack.c.l.b16 %v216
    %v249 = vunpack.c.l.b16 %v217
    %v250 = vunpack.c.l.b16 %v218
    %v251 = vpack.c.b16 %v236, %v235
    %v252 = vpack.c.b16 %v238, %v237
    %v253 = vpack.c.b16 %v240, %v239
    %v254 = vpack.c.b16 %v242, %v241
    %v255 = vpack.c.b16 %v244, %v243
    %v256 = vpack.c.b16 %v246, %v245
    %v257 = vpack.c.b16 %v248, %v247
    %v258 = vpack.c.b16 %v250, %v249
    %267 = vmatprep.subr.bf16.mxu0 0
    %268 = vmatpush1.bf16.msra.mxu0 %v251
    %269 = vmatprep.subr.bf16.mxu0 0
    %270 = vmatpush1.bf16.msra.mxu0 %v252
    %271 = vmatprep.subr.bf16.mxu0 0
    %272 = vmatpush1.bf16.msra.mxu0 %v253
    %273 = vmatprep.subr.bf16.mxu0 0
    %274 = vmatpush1.bf16.msra.mxu0 %v254
    %275 = vmatprep.subr.bf16.mxu0 0
    %276 = vmatpush1.bf16.msra.mxu0 %v255
    %277 = vmatprep.subr.bf16.mxu0 0
    %278 = vmatpush1.bf16.msra.mxu0 %v256
    %279 = vmatprep.subr.bf16.mxu0 0
    %280 = vmatpush1.bf16.msra.mxu0 %v257
    %281 = vmatprep.subr.bf16.mxu0 0
    %282 = vmatpush1.bf16.msra.mxu0 %v258
    %283 = vmatprep.subr.bf16.mxu0 0
    %284 = vmatpush1.bf16.msra.mxu0 0
    %285 = vmatprep.subr.bf16.mxu0 0
    %286 = vmatpush1.bf16.msra.mxu0 0
    %287 = vmatprep.subr.bf16.mxu0 0
    %288 = vmatpush1.bf16.msra.mxu0 0
    %289 = vmatprep.subr.bf16.mxu0 0
    %290 = vmatpush1.bf16.msra.mxu0 0
    %291 = vmatprep.subr.bf16.mxu0 0
    %292 = vmatpush1.bf16.msra.mxu0 0
    %293 = vmatprep.subr.bf16.mxu0 0
    %294 = vmatpush1.bf16.msra.mxu0 0
    %295 = vmatprep.subr.bf16.mxu0 0
    %296 = vmatpush1.bf16.msra.mxu0 0
    %297 = vmatprep.subr.bf16.mxu0 0
    %298 = vmatpush1.bf16.msra.mxu0 0
    %299 = vmatprep.mubr.bf16.mxu0 0
    %300 = vmatmul.mubr.bf16.gmra.mrb[0].mxu0 %v202
    %v301 = vpop.f32.mrb[0].mxu0
    %v302 = vadd.f32 0.0, %v301
    %v303 = vpop.f32.mrb[0].mxu0
    %v304 = vpop.f32.mrb[0].mxu0
    %v305 = vpop.f32.mrb[0].mxu0
    %306 = vdwg.mxu0
    %vm307 = vcmask 130048
    %308 = vst.msk [vmem:[#allocation5] sm:$0xff] %vm307, %v302
    // Predicated region
    $region22: #{mlpnet_forward.1} parent=1 // pred_check
      _
    $region23: #{mlpnet_forward.1} parent=1 // pred_check_branch
      %310 = sbr.rel (0) target = $region25
    $region24: #{mlpnet_forward.1} parent=1 // pred_region
      %s312 = ssub.s32 128, 128
      %313 = vsyncadd [#allocation4], %s312
      %s315 = sshll.u32 [#allocation5], 4
      %s316 = int_to_ptr.vmem [resolvable:$true] %s315
      %318 = dma.vmem_to_hbm [thread:$0]  %s316, 128, %s4, [#allocation4]
    $region25: #{mlpnet_forward.1} parent=1 // pred_fallthru
      _
    // Predicated region
    $region26: #{mlpnet_forward.1} parent=1 // pred_check
      _
    $region27: #{mlpnet_forward.1} parent=1 // pred_check_branch
      %320 = sbr.rel (0) target = $region29
    $region28: #{mlpnet_forward.1} parent=1 // pred_region
      %321 = dma.done [#allocation4], 128
    $region29: #{mlpnet_forward.1} parent=1 // pred_fallthru
      _
    %322 = vsyncpa [#allocation3], 1
    %323 = vsyncpa [#allocation4], 1

</llo_original>
